<compile_context>
chip_gen: v6e
topology: v6e:2x2x1
jax: 0.10.0
libtpu: 0.0.40
codegen_flags: <defaults>
</compile_context>

<pallas_src>
import functools

import jax
import jax.numpy as jnp
from jax.experimental import pallas as pl
from jax.experimental.pallas import tpu as pltpu


def _round_up(n, m):
    return (n + m - 1) // m * m


def _disc_kernel(x_ref, w1_ref, b1_ref, w2_ref, b2_ref, w3_ref, b3_ref, o_ref):
    x = x_ref[...]  # (block_b, in_dims) f32

    # Linear 1 + LeakyReLU(0.2)
    h = jnp.dot(x, w1_ref[...], preferred_element_type=jnp.float32) + b1_ref[...]
    h = jnp.maximum(h, 0.2 * h)

    # Linear 2 + LeakyReLU(0.2)
    h = jnp.dot(h, w2_ref[...], preferred_element_type=jnp.float32) + b2_ref[...]
    h = jnp.maximum(h, 0.2 * h)

    # Linear 3 (-> 3 classes)
    logits = jnp.dot(h, w3_ref[...], preferred_element_type=jnp.float32) + b3_ref[...]

    # Softmax over dim=1 (class axis): max-subtract, exp, EUP approx reciprocal.
    m = jnp.max(logits, axis=-1, keepdims=True)
    e = jnp.exp(logits - m)
    denom = jnp.sum(e, axis=-1, keepdims=True)
    probs = e * pl.reciprocal(denom, approx=True)

    o_ref[...] = probs.astype(o_ref.dtype)


@functools.partial(jax.jit, static_argnames=("block_b",))
def discriminator_layer(x, params, *, block_b=256):
    """Fused forward pass of DiscriminatorLayer.

    x: (B, in_dims) float32
    params: dict with w1 (in,hid), b1 (1,hid), w2 (hid,hid), b2 (1,hid),
            w3 (hid,3), b3 (1,3)   (nn.Linear weights stored transposed)
    returns: (B, 3) float32 softmax probabilities
    """
    B, in_dims = x.shape
    hid = params["w1"].shape[1]
    out_dim = params["w3"].shape[1]  # 3

    # Lane-dense hidden dim (zero padding is exact: padded weight columns/rows
    # contribute nothing to the real outputs).
    hid_p = _round_up(hid, 128)

    # Batch tile: clamp to the (8-rounded) batch so tiny batches don't over-pad,
    # then pad B up to a multiple of the tile (only when necessary).
    bb = min(block_b, _round_up(B, 8))
    B_p = _round_up(B, bb)
    grid = (B_p // bb,)

    f32 = jnp.float32
    xp = x.astype(f32)
    if B_p != B:
        xp = jnp.pad(xp, ((0, B_p - B), (0, 0)))

    w1 = jnp.pad(params["w1"].astype(f32), ((0, 0), (0, hid_p - hid)))
    b1 = jnp.pad(params["b1"].astype(f32), ((0, 0), (0, hid_p - hid)))
    w2 = jnp.pad(params["w2"].astype(f32), ((0, hid_p - hid), (0, hid_p - hid)))
    b2 = jnp.pad(params["b2"].astype(f32), ((0, 0), (0, hid_p - hid)))
    w3 = jnp.pad(params["w3"].astype(f32), ((0, hid_p - hid), (0, 0)))
    b3 = params["b3"].astype(f32)

    # Grid-invariant blocks (index map always (0, 0)) -> DMA'd once by the pipeline.
    def const_spec(shape):
        return pl.BlockSpec(shape, lambda i: (0, 0))

    # VMEM budget: weights (double-buffered worst case) + streamed x/out tiles
    # + a few f32 activation tiles, with margin. Clamp to [32, 64] MiB so it is
    # valid on v7x (64 MiB physical) as well as v5e/v6e.
    weight_bytes = 4 * (in_dims * hid_p + hid_p * hid_p + hid_p * out_dim
                        + 2 * hid_p + out_dim)
    stream_bytes = 2 * bb * in_dims * 4 + 2 * bb * out_dim * 4
    act_bytes = 3 * bb * hid_p * 4
    est = int(1.5 * (2 * weight_bytes + stream_bytes + act_bytes)) + (4 << 20)
    vmem_bytes = max(32 << 20, min(64 << 20, est))

    out_p = pl.pallas_call(
        _disc_kernel,
        out_shape=jax.ShapeDtypeStruct((B_p, out_dim), jnp.float32),
        grid_spec=pltpu.PrefetchScalarGridSpec(
            num_scalar_prefetch=0,
            grid=grid,
            in_specs=[
                pl.BlockSpec((bb, in_dims), lambda i: (i, 0)),  # x tile (streamed)
                const_spec((in_dims, hid_p)),   # w1
                const_spec((1, hid_p)),         # b1
                const_spec((hid_p, hid_p)),     # w2
                const_spec((1, hid_p)),         # b2
                const_spec((hid_p, out_dim)),   # w3
                const_spec((1, out_dim)),       # b3
            ],
            out_specs=pl.BlockSpec((bb, out_dim), lambda i: (i, 0)),
        ),
        compiler_params=pltpu.CompilerParams(
            dimension_semantics=("parallel",),
            vmem_limit_bytes=vmem_bytes,
        ),
    )(xp, w1, b1, w2, b2, w3, b3)

    return out_p[:B]


def init_params(key, in_dims):
    """Deterministic init matching the PyTorch module's shapes
    (nn.Linear weight (out,in) stored here transposed as (in,out))."""
    hid = in_dims // 2
    k1, k2, k3, k4, k5, k6 = jax.random.split(key, 6)

    def lin_init(kw, kb, fan_in, fan_out):
        bound = 1.0 / jnp.sqrt(fan_in)
        w = jax.random.uniform(kw, (fan_in, fan_out), jnp.float32, -bound, bound)
        b = jax.random.uniform(kb, (1, fan_out), jnp.float32, -bound, bound)
        return w, b

    w1, b1 = lin_init(k1, k2, in_dims, hid)
    w2, b2 = lin_init(k3, k4, hid, hid)
    w3, b3 = lin_init(k5, k6, hid, 3)
    return {"w1": w1, "b1": b1, "w2": w2, "b2": b2, "w3": w3, "b3": b3}


def _reference_f32(x, p):
    """Pure f32 reference (exact PyTorch-module semantics)."""
    h = x @ p["w1"] + p["b1"]
    h = jnp.where(h >= 0, h, 0.2 * h)
    h = h @ p["w2"] + p["b2"]
    h = jnp.where(h >= 0, h, 0.2 * h)
    logits = h @ p["w3"] + p["b3"]
    return jax.nn.softmax(logits, axis=1)


if __name__ == "__main__":
    key = jax.random.PRNGKey(0)
    kx, kx2, kp = jax.random.split(key, 3)

    in_dims = 32  # hid_dims = 16
    params = init_params(kp, in_dims)

    # Case 1: small batch (matches original toy shapes).
    B1 = 8
    x1 = jax.random.normal(kx, (B1, in_dims), dtype=jnp.float32)
    out1 = jax.block_until_ready(discriminator_layer(x1, params))
    ref1 = _reference_f32(x1, params)
    assert out1.shape == (B1, 3)
    assert jnp.allclose(out1, ref1, atol=5e-3), "mismatch vs f32 reference"
    assert jnp.allclose(jnp.sum(out1, axis=1), 1.0, atol=5e-3), "softmax rows must sum to 1"

    # Case 2: batch not divisible by the tile, multiple grid steps (padding path).
    B2 = 300
    x2 = jax.random.normal(kx2, (B2, in_dims), dtype=jnp.float32)
    out2 = jax.block_until_ready(discriminator_layer(x2, params, block_b=256))
    ref2 = _reference_f32(x2, params)
    assert out2.shape == (B2, 3)
    assert jnp.allclose(out2, ref2, atol=5e-3), "mismatch vs f32 reference (padded batch)"
    assert jnp.allclose(jnp.sum(out2, axis=1), 1.0, atol=5e-3), "softmax rows must sum to 1 (padded batch)"

    print("KERNEL_OK")
</pallas_src>

<mosaic_0001>
module attributes {stable_mosaic.version = 11 : i64} {
  func.func @_disc_kernel(%arg0: i32, %arg1: memref<8x32xf32, #tpu.memory_space<vmem>>, %arg2: memref<32x128xf32, #tpu.memory_space<vmem>>, %arg3: memref<1x128xf32, #tpu.memory_space<vmem>>, %arg4: memref<128x128xf32, #tpu.memory_space<vmem>>, %arg5: memref<1x128xf32, #tpu.memory_space<vmem>>, %arg6: memref<128x3xf32, #tpu.memory_space<vmem>>, %arg7: memref<1x3xf32, #tpu.memory_space<vmem>>, %arg8: memref<8x3xf32, #tpu.memory_space<vmem>>) attributes {dimension_semantics = [#tpu.dimension_semantics<parallel>], iteration_bounds = array<i64: 1>, scalar_prefetch = 0 : i64, scratch_operands = 0 : i64, tpu.core_type = #tpu.core_type<tc>, window_params = [{transform_indices = @transform_0, window_bounds = array<i64: 8, 32>}, {pipeline_mode = #tpu.pipeline_mode<synchronous>, transform_indices = @transform_1, window_bounds = array<i64: 32, 128>}, {pipeline_mode = #tpu.pipeline_mode<synchronous>, transform_indices = @transform_2, window_bounds = array<i64: 1, 128>}, {pipeline_mode = #tpu.pipeline_mode<synchronous>, transform_indices = @transform_3, window_bounds = array<i64: 128, 128>}, {pipeline_mode = #tpu.pipeline_mode<synchronous>, transform_indices = @transform_4, window_bounds = array<i64: 1, 128>}, {pipeline_mode = #tpu.pipeline_mode<synchronous>, transform_indices = @transform_5, window_bounds = array<i64: 128, 3>}, {pipeline_mode = #tpu.pipeline_mode<synchronous>, transform_indices = @transform_6, window_bounds = array<i64: 1, 3>}, {transform_indices = @transform_7, window_bounds = array<i64: 8, 3>}]} {
    %c0 = arith.constant 0 : index
    %c0_0 = arith.constant 0 : index
    %0 = vector.load %arg1[%c0, %c0_0] : memref<8x32xf32, #tpu.memory_space<vmem>>, vector<8x32xf32>
    %c0_1 = arith.constant 0 : index
    %c0_2 = arith.constant 0 : index
    %1 = vector.load %arg2[%c0_1, %c0_2] : memref<32x128xf32, #tpu.memory_space<vmem>>, vector<32x128xf32>
    %cst = arith.constant dense<0.000000e+00> : vector<8x128xf32>
    %2 = tpu.matmul %0, %1, %cst {dimension_numbers = #tpu.dot_dimension_numbers<[1], [0], [0], [1], [0, 0, 1, 1], [], []>} : vector<8x32xf32>, vector<32x128xf32>, vector<8x128xf32> -> vector<8x128xf32>
    %c0_3 = arith.constant 0 : index
    %c0_4 = arith.constant 0 : index
    %3 = vector.load %arg3[%c0_3, %c0_4] : memref<1x128xf32, #tpu.memory_space<vmem>>, vector<1x128xf32>
    %4 = vector.broadcast %3 : vector<1x128xf32> to vector<8x128xf32>
    %5 = arith.addf %2, %4 : vector<8x128xf32>
    %cst_5 = arith.constant 2.000000e-01 : f32
    %6 = vector.broadcast %cst_5 : f32 to vector<8x128xf32>
    %7 = arith.mulf %6, %5 : vector<8x128xf32>
    %8 = arith.maximumf %5, %7 : vector<8x128xf32>
    %c0_6 = arith.constant 0 : index
    %c0_7 = arith.constant 0 : index
    %9 = vector.load %arg4[%c0_6, %c0_7] : memref<128x128xf32, #tpu.memory_space<vmem>>, vector<128x128xf32>
    %cst_8 = arith.constant dense<0.000000e+00> : vector<8x128xf32>
    %10 = tpu.matmul %8, %9, %cst_8 {dimension_numbers = #tpu.dot_dimension_numbers<[1], [0], [0], [1], [0, 0, 1, 1], [], []>} : vector<8x128xf32>, vector<128x128xf32>, vector<8x128xf32> -> vector<8x128xf32>
    %c0_9 = arith.constant 0 : index
    %c0_10 = arith.constant 0 : index
    %11 = vector.load %arg5[%c0_9, %c0_10] : memref<1x128xf32, #tpu.memory_space<vmem>>, vector<1x128xf32>
    %12 = vector.broadcast %11 : vector<1x128xf32> to vector<8x128xf32>
    %13 = arith.addf %10, %12 : vector<8x128xf32>
    %cst_11 = arith.constant 2.000000e-01 : f32
    %14 = vector.broadcast %cst_11 : f32 to vector<8x128xf32>
    %15 = arith.mulf %14, %13 : vector<8x128xf32>
    %16 = arith.maximumf %13, %15 : vector<8x128xf32>
    %c0_12 = arith.constant 0 : index
    %c0_13 = arith.constant 0 : index
    %17 = vector.load %arg6[%c0_12, %c0_13] : memref<128x3xf32, #tpu.memory_space<vmem>>, vector<128x3xf32>
    %cst_14 = arith.constant dense<0.000000e+00> : vector<8x3xf32>
    %18 = tpu.matmul %16, %17, %cst_14 {dimension_numbers = #tpu.dot_dimension_numbers<[1], [0], [0], [1], [0, 0, 1, 1], [], []>} : vector<8x128xf32>, vector<128x3xf32>, vector<8x3xf32> -> vector<8x3xf32>
    %c0_15 = arith.constant 0 : index
    %c0_16 = arith.constant 0 : index
    %19 = vector.load %arg7[%c0_15, %c0_16] : memref<1x3xf32, #tpu.memory_space<vmem>>, vector<1x3xf32>
    %20 = vector.broadcast %19 : vector<1x3xf32> to vector<8x3xf32>
    %21 = arith.addf %18, %20 : vector<8x3xf32>
    %cst_17 = arith.constant dense<0xFF800000> : vector<8xf32>
    %22 = vector.multi_reduction <maximumf>, %21, %cst_17 [1] : vector<8x3xf32> to vector<8xf32>
    %23 = vector.shape_cast %22 : vector<8xf32> to vector<8x1xf32>
    %24 = vector.broadcast %23 : vector<8x1xf32> to vector<8x3xf32>
    %25 = arith.subf %21, %24 : vector<8x3xf32>
    %26 = math.exp %25 : vector<8x3xf32>
    %cst_18 = arith.constant dense<0.000000e+00> : vector<8xf32>
    %27 = vector.multi_reduction <add>, %26, %cst_18 [1] : vector<8x3xf32> to vector<8xf32>
    %28 = vector.shape_cast %27 : vector<8xf32> to vector<8x1xf32>
    %29 = tpu.reciprocal %28 {approx = true} : vector<8x1xf32> -> vector<8x1xf32>
    %30 = vector.broadcast %29 : vector<8x1xf32> to vector<8x3xf32>
    %31 = arith.mulf %26, %30 : vector<8x3xf32>
    %c0_19 = arith.constant 0 : index
    %c0_20 = arith.constant 0 : index
    %32 = vector.load %arg8[%c0_19, %c0_20] : memref<8x3xf32, #tpu.memory_space<vmem>>, vector<8x3xf32>
    tpu.vector_store %arg8[%c0_19, %c0_20], %31 {strides = array<i32>} : memref<8x3xf32, #tpu.memory_space<vmem>>, vector<8x3xf32>,
    return
  }
  func.func @transform_0(%arg0: i32) -> (i32, i32) {
    %c0_i32 = arith.constant 0 : i32
    %c0_i32_0 = arith.constant 0 : i32
    return %arg0, %c0_i32 : i32, i32
  }
  func.func @transform_1(%arg0: i32) -> (i32, i32) {
    %c0_i32 = arith.constant 0 : i32
    %c0_i32_0 = arith.constant 0 : i32
    %c0_i32_1 = arith.constant 0 : i32
    return %c0_i32, %c0_i32_0 : i32, i32
  }
  func.func @transform_2(%arg0: i32) -> (i32, i32) {
    %c0_i32 = arith.constant 0 : i32
    %c0_i32_0 = arith.constant 0 : i32
    %c0_i32_1 = arith.constant 0 : i32
    return %c0_i32, %c0_i32_0 : i32, i32
  }
  func.func @transform_3(%arg0: i32) -> (i32, i32) {
    %c0_i32 = arith.constant 0 : i32
    %c0_i32_0 = arith.constant 0 : i32
    %c0_i32_1 = arith.constant 0 : i32
    return %c0_i32, %c0_i32_0 : i32, i32
  }
  func.func @transform_4(%arg0: i32) -> (i32, i32) {
    %c0_i32 = arith.constant 0 : i32
    %c0_i32_0 = arith.constant 0 : i32
    %c0_i32_1 = arith.constant 0 : i32
    return %c0_i32, %c0_i32_0 : i32, i32
  }
  func.func @transform_5(%arg0: i32) -> (i32, i32) {
    %c0_i32 = arith.constant 0 : i32
    %c0_i32_0 = arith.constant 0 : i32
    %c0_i32_1 = arith.constant 0 : i32
    return %c0_i32, %c0_i32_0 : i32, i32
  }
  func.func @transform_6(%arg0: i32) -> (i32, i32) {
    %c0_i32 = arith.constant 0 : i32
    %c0_i32_0 = arith.constant 0 : i32
    %c0_i32_1 = arith.constant 0 : i32
    return %c0_i32, %c0_i32_0 : i32, i32
  }
  func.func @transform_7(%arg0: i32) -> (i32, i32) {
    %c0_i32 = arith.constant 0 : i32
    %c0_i32_0 = arith.constant 0 : i32
    return %arg0, %c0_i32 : i32, i32
  }
}

</mosaic_0001>

<llo_original>
// kernel: discriminator_layer.1
$region0: #{discriminator_layer.1}
  #allocation0 [shape = 'u32[]', space=smem, size = 0x4, offset = 0x4, fixed_abs, tag = 'smem constant byte address 0x4 - core index']
  #allocation1 [shape = 'u32[144,128]{1,0:T(1,128)}', space=vmem, size = 0x12000, scoped, tag = 'internal scratch']
  %s0 = inlined_call_operand.vmem [shape: f32[8,32], index: 0, kind: input, shape index: {}]
  %s1 = inlined_call_operand.vmem [shape: f32[32,128], index: 1, kind: input, shape index: {}]
  %s2 = inlined_call_operand.vmem [shape: f32[1,128], index: 2, kind: input, shape index: {}]
  %s3 = inlined_call_operand.vmem [shape: f32[128,128], index: 3, kind: input, shape index: {}]
  %s4 = inlined_call_operand.vmem [shape: f32[1,128], index: 4, kind: input, shape index: {}]
  %s5 = inlined_call_operand.vmem [shape: f32[128,3], index: 5, kind: input, shape index: {}]
  %s6 = inlined_call_operand.vmem [shape: f32[1,3], index: 6, kind: input, shape index: {}]
  %s7 = inlined_call_operand.vmem [shape: f32[8,3], index: 7, kind: output, shape index: {}]
  %s8 = sld [smem:[#allocation0]]
  $region38: #{discriminator_layer.1} parent=0
    _
  %s10 = ssub.s32 1, %s8
  %s11 = scalar_select 0, %s10, %s8
  // Predicated region
  $region2: #{discriminator_layer.1} parent=0 // pred_check
    _
  $region3: #{discriminator_layer.1} parent=0 // pred_check_branch
    %13 = sbr.rel (0) target = $region5
  $region4: #{discriminator_layer.1} parent=0 // pred_region
    _
  $region5: #{discriminator_layer.1} parent=0 // pred_fallthru
    _
  // Predicated region
  $region6: #{discriminator_layer.1} parent=0 // pred_check
    _
  $region7: #{discriminator_layer.1} parent=0 // pred_check_branch
    %15 = sbr.rel (0) target = $region9
  $region8: #{discriminator_layer.1} parent=0 // pred_region
    _
  $region9: #{discriminator_layer.1} parent=0 // pred_fallthru
    _
  // Predicated region
  $region10: #{discriminator_layer.1} parent=0 // pred_check
    _
  $region11: #{discriminator_layer.1} parent=0 // pred_check_branch
    %17 = sbr.rel (0) target = $region13
  $region12: #{discriminator_layer.1} parent=0 // pred_region
    _
  $region13: #{discriminator_layer.1} parent=0 // pred_fallthru
    _
  // Predicated region
  $region14: #{discriminator_layer.1} parent=0 // pred_check
    _
  $region15: #{discriminator_layer.1} parent=0 // pred_check_branch
    %19 = sbr.rel (0) target = $region17
  $region16: #{discriminator_layer.1} parent=0 // pred_region
    _
  $region17: #{discriminator_layer.1} parent=0 // pred_fallthru
    _
  // Predicated region
  $region18: #{discriminator_layer.1} parent=0 // pred_check
    _
  $region19: #{discriminator_layer.1} parent=0 // pred_check_branch
    %21 = sbr.rel (0) target = $region21
  $region20: #{discriminator_layer.1} parent=0 // pred_region
    _
  $region21: #{discriminator_layer.1} parent=0 // pred_fallthru
    _
  // Predicated region
  $region22: #{discriminator_layer.1} parent=0 // pred_check
    _
  $region23: #{discriminator_layer.1} parent=0 // pred_check_branch
    %23 = sbr.rel (0) target = $region25
  $region24: #{discriminator_layer.1} parent=0 // pred_region
    _
  $region25: #{discriminator_layer.1} parent=0 // pred_fallthru
    _
  // Predicated region
  $region26: #{discriminator_layer.1} parent=0 // pred_check
    _
  $region27: #{discriminator_layer.1} parent=0 // pred_check_branch
    %25 = sbr.rel (0) target = $region29
  $region28: #{discriminator_layer.1} parent=0 // pred_region
    _
  $region29: #{discriminator_layer.1} parent=0 // pred_fallthru
    _
  %v26 = vld [vmem:[%s0] sm:$0xff]
  %v27 = vld [vmem:[%s1] sm:$0xff]
  %v28 = vld [vmem:[%s1 + $0x8] sm:$0xff]
  %v29 = vld [vmem:[%s1 + $0x10] sm:$0xff]
  %v30 = vld [vmem:[%s1 + $0x18] sm:$0xff]
  %v31 = vld [vmem:[%s2] sm:$0x1]
  %v33 = vlaneseq
  %v34 = vshrl.u32 %v33, 7
  %v35 = vsub.s32 0, %v34
  %v36 = vrot.slane %v31, %v35
  %vm38 = vcmask 261120
  %v40 = vsel %vm38, %v26, 0
  %42 = vmatprep.subr.mxu0 0.0
  %43 = vmatpush1.msra.mxu0 0.0
  %44 = vmatprep.subr.mxu0 0.0
  %45 = vmatpush1.msra.mxu0 0.0
  %46 = vmatprep.subr.mxu0 0.0
  %47 = vmatpush1.msra.mxu0 0.0
  %48 = vmatprep.subr.mxu0 0.0
  %49 = vmatpush1.msra.mxu0 0.0
  %50 = vmatprep.subr.mxu0 0.0
  %51 = vmatpush1.msra.mxu0 0.0
  %52 = vmatprep.subr.mxu0 0.0
  %53 = vmatpush1.msra.mxu0 0.0
  %54 = vmatprep.subr.mxu0 0.0
  %55 = vmatpush1.msra.mxu0 0.0
  %56 = vmatprep.subr.mxu0 0.0
  %57 = vmatpush1.msra.mxu0 0.0
  %58 = vmatprep.subr.mxu0 0.0
  %59 = vmatpush1.msra.mxu0 0.0
  %60 = vmatprep.subr.mxu0 0.0
  %61 = vmatpush1.msra.mxu0 0.0
  %62 = vmatprep.subr.mxu0 0.0
  %63 = vmatpush1.msra.mxu0 0.0
  %64 = vmatprep.subr.mxu0 0.0
  %65 = vmatpush1.msra.mxu0 0.0
  %66 = vmatprep.subr.mxu0 0.0
  %67 = vmatpush1.msra.mxu0 %v30
  %68 = vmatprep.subr.mxu0 0.0
  %69 = vmatpush1.msra.mxu0 %v29
  %70 = vmatprep.subr.mxu0 0.0
  %71 = vmatpush1.msra.mxu0 %v28
  %72 = vmatprep.subr.mxu0 0.0
  %73 = vmatpush1.msra.mxu0 %v27
  %74 = vmatprep.subr.mxu0 0.0
  %75 = vmatpush2.msra.mxu0 0.0
  %76 = vmatprep.subr.mxu0 0.0
  %77 = vmatpush2.msra.mxu0 0.0
  %78 = vmatprep.subr.mxu0 0.0
  %79 = vmatpush2.msra.mxu0 0.0
  %80 = vmatprep.subr.mxu0 0.0
  %81 = vmatpush2.msra.mxu0 0.0
  %82 = vmatprep.subr.mxu0 0.0
  %83 = vmatpush2.msra.mxu0 0.0
  %84 = vmatprep.subr.mxu0 0.0
  %85 = vmatpush2.msra.mxu0 0.0
  %86 = vmatprep.subr.mxu0 0.0
  %87 = vmatpush2.msra.mxu0 0.0
  %88 = vmatprep.subr.mxu0 0.0
  %89 = vmatpush2.msra.mxu0 0.0
  %90 = vmatprep.subr.mxu0 0.0
  %91 = vmatpush2.msra.mxu0 0.0
  %92 = vmatprep.subr.mxu0 0.0
  %93 = vmatpush2.msra.mxu0 0.0
  %94 = vmatprep.subr.mxu0 0.0
  %95 = vmatpush2.msra.mxu0 0.0
  %96 = vmatprep.subr.mxu0 0.0
  %97 = vmatpush2.msra.mxu0 0.0
  %98 = vmatprep.subr.mxu0 0.0
  %99 = vmatpush2.msra.mxu0 0.0
  %100 = vmatprep.subr.mxu0 0.0
  %101 = vmatpush2.msra.mxu0 0.0
  %102 = vmatprep.subr.mxu0 0.0
  %103 = vmatpush2.msra.mxu0 0.0
  %104 = vmatprep.subr.mxu0 0.0
  %105 = vmatpush2.msra.mxu0 0.0
  %106 = vmatprep.mubr.f32.mxu0 0.0
  %107 = vmatmul.mubr.f32.gmra.mxu0 %v40
  %v108 = vpop.f32.mrf.mxu0
  %v109 = vadd.f32 %v36, %v108
  %v110 = vpop.f32.mrf.mxu0
  %111 = vdwg.mxu0
  %v112 = vmul.f32 %v109, 0.2
  %v113 = vmax.f32 %v109, %v112
  %v114 = vld [vmem:[%s3] sm:$0xff]
  %v115 = vld [vmem:[%s3 + $0x8] sm:$0xff]
  %v116 = vld [vmem:[%s3 + $0x10] sm:$0xff]
  %v117 = vld [vmem:[%s3 + $0x18] sm:$0xff]
  %v118 = vld [vmem:[%s3 + $0x20] sm:$0xff]
  %v119 = vld [vmem:[%s3 + $0x28] sm:$0xff]
  %v120 = vld [vmem:[%s3 + $0x30] sm:$0xff]
  %v121 = vld [vmem:[%s3 + $0x38] sm:$0xff]
  %v122 = vld [vmem:[%s3 + $0x40] sm:$0xff]
  %v123 = vld [vmem:[%s3 + $0x48] sm:$0xff]
  %v124 = vld [vmem:[%s3 + $0x50] sm:$0xff]
  %v125 = vld [vmem:[%s3 + $0x58] sm:$0xff]
  %v126 = vld [vmem:[%s3 + $0x60] sm:$0xff]
  %v127 = vld [vmem:[%s3 + $0x68] sm:$0xff]
  %v128 = vld [vmem:[%s3 + $0x70] sm:$0xff]
  %v129 = vld [vmem:[%s3 + $0x78] sm:$0xff]
  %v130 = vld [vmem:[%s4] sm:$0x1]
  %v132 = vlaneseq
  %v133 = vshrl.u32 %v132, 7
  %v134 = vsub.s32 0, %v133
  %v135 = vrot.slane %v130, %v134
  %137 = vmatprep.subr.mxu0 0.0
  %138 = vmatpush1.msra.mxu0 %v129
  %139 = vmatprep.subr.mxu0 0.0
  %140 = vmatpush1.msra.mxu0 %v128
  %141 = vmatprep.subr.mxu0 0.0
  %142 = vmatpush1.msra.mxu0 %v127
  %143 = vmatprep.subr.mxu0 0.0
  %144 = vmatpush1.msra.mxu0 %v126
  %145 = vmatprep.subr.mxu0 0.0
  %146 = vmatpush1.msra.mxu0 %v125
  %147 = vmatprep.subr.mxu0 0.0
  %148 = vmatpush1.msra.mxu0 %v124
  %149 = vmatprep.subr.mxu0 0.0
  %150 = vmatpush1.msra.mxu0 %v123
  %151 = vmatprep.subr.mxu0 0.0
  %152 = vmatpush1.msra.mxu0 %v122
  %153 = vmatprep.subr.mxu0 0.0
  %154 = vmatpush1.msra.mxu0 %v121
  %155 = vmatprep.subr.mxu0 0.0
  %156 = vmatpush1.msra.mxu0 %v120
  %157 = vmatprep.subr.mxu0 0.0
  %158 = vmatpush1.msra.mxu0 %v119
  %159 = vmatprep.subr.mxu0 0.0
  %160 = vmatpush1.msra.mxu0 %v118
  %161 = vmatprep.subr.mxu0 0.0
  %162 = vmatpush1.msra.mxu0 %v117
  %163 = vmatprep.subr.mxu0 0.0
  %164 = vmatpush1.msra.mxu0 %v116
  %165 = vmatprep.subr.mxu0 0.0
  %166 = vmatpush1.msra.mxu0 %v115
  %167 = vmatprep.subr.mxu0 0.0
  %168 = vmatpush1.msra.mxu0 %v114
  %169 = vmatprep.subr.mxu0 0.0
  %170 = vmatpush2.msra.mxu0 0.0
  %171 = vmatprep.subr.mxu0 0.0
  %172 = vmatpush2.msra.mxu0 0.0
  %173 = vmatprep.subr.mxu0 0.0
  %174 = vmatpush2.msra.mxu0 0.0
  %175 = vmatprep.subr.mxu0 0.0
  %176 = vmatpush2.msra.mxu0 0.0
  %177 = vmatprep.subr.mxu0 0.0
  %178 = vmatpush2.msra.mxu0 0.0
  %179 = vmatprep.subr.mxu0 0.0
  %180 = vmatpush2.msra.mxu0 0.0
  %181 = vmatprep.subr.mxu0 0.0
  %182 = vmatpush2.msra.mxu0 0.0
  %183 = vmatprep.subr.mxu0 0.0
  %184 = vmatpush2.msra.mxu0 0.0
  %185 = vmatprep.subr.mxu0 0.0
  %186 = vmatpush2.msra.mxu0 0.0
  %187 = vmatprep.subr.mxu0 0.0
  %188 = vmatpush2.msra.mxu0 0.0
  %189 = vmatprep.subr.mxu0 0.0
  %190 = vmatpush2.msra.mxu0 0.0
  %191 = vmatprep.subr.mxu0 0.0
  %192 = vmatpush2.msra.mxu0 0.0
  %193 = vmatprep.subr.mxu0 0.0
  %194 = vmatpush2.msra.mxu0 0.0
  %195 = vmatprep.subr.mxu0 0.0
  %196 = vmatpush2.msra.mxu0 0.0
  %197 = vmatprep.subr.mxu0 0.0
  %198 = vmatpush2.msra.mxu0 0.0
  %199 = vmatprep.subr.mxu0 0.0
  %200 = vmatpush2.msra.mxu0 0.0
  %201 = vmatprep.mubr.f32.mxu0 0.0
  %202 = vmatmul.mubr.f32.gmra.mxu0 %v113
  %v203 = vpop.f32.mrf.mxu0
  %v204 = vadd.f32 %v135, %v203
  %v205 = vpop.f32.mrf.mxu0
  %206 = vdwg.mxu0
  %v207 = vmul.f32 %v204, 0.2
  %v208 = vmax.f32 %v204, %v207
  %v209 = vld [vmem:[%s5] sm:$0xff]
  %v210 = vld [vmem:[%s5 + $0x8] sm:$0xff]
  %v211 = vld [vmem:[%s5 + $0x10] sm:$0xff]
  %v212 = vld [vmem:[%s5 + $0x18] sm:$0xff]
  %v213 = vld [vmem:[%s5 + $0x20] sm:$0xff]
  %v214 = vld [vmem:[%s5 + $0x28] sm:$0xff]
  %v215 = vld [vmem:[%s5 + $0x30] sm:$0xff]
  %v216 = vld [vmem:[%s5 + $0x38] sm:$0xff]
  %v217 = vld [vmem:[%s5 + $0x40] sm:$0xff]
  %v218 = vld [vmem:[%s5 + $0x48] sm:$0xff]
  %v219 = vld [vmem:[%s5 + $0x50] sm:$0xff]
  %v220 = vld [vmem:[%s5 + $0x58] sm:$0xff]
  %v221 = vld [vmem:[%s5 + $0x60] sm:$0xff]
  %v222 = vld [vmem:[%s5 + $0x68] sm:$0xff]
  %v223 = vld [vmem:[%s5 + $0x70] sm:$0xff]
  %v224 = vld [vmem:[%s5 + $0x78] sm:$0xff]
  %v225 = vld [vmem:[%s6] sm:$0x1]
  %v227 = vlaneseq
  %v228 = vshrl.u32 %v227, 7
  %v229 = vsub.s32 0, %v228
  %v230 = vrot.slane %v225, %v229
  %232 = vmatprep.subr.mxu0 0.0
  %233 = vmatpush1.msra.mxu0 %v224
  %234 = vmatprep.subr.mxu0 0.0
  %235 = vmatpush1.msra.mxu0 %v223
  %236 = vmatprep.subr.mxu0 0.0
  %237 = vmatpush1.msra.mxu0 %v222
  %238 = vmatprep.subr.mxu0 0.0
  %239 = vmatpush1.msra.mxu0 %v221
  %240 = vmatprep.subr.mxu0 0.0
  %241 = vmatpush1.msra.mxu0 %v220
  %242 = vmatprep.subr.mxu0 0.0
  %243 = vmatpush1.msra.mxu0 %v219
  %244 = vmatprep.subr.mxu0 0.0
  %245 = vmatpush1.msra.mxu0 %v218
  %246 = vmatprep.subr.mxu0 0.0
  %247 = vmatpush1.msra.mxu0 %v217
  %248 = vmatprep.subr.mxu0 0.0
  %249 = vmatpush1.msra.mxu0 %v216
  %250 = vmatprep.subr.mxu0 0.0
  %251 = vmatpush1.msra.mxu0 %v215
  %252 = vmatprep.subr.mxu0 0.0
  %253 = vmatpush1.msra.mxu0 %v214
  %254 = vmatprep.subr.mxu0 0.0
  %255 = vmatpush1.msra.mxu0 %v213
  %256 = vmatprep.subr.mxu0 0.0
  %257 = vmatpush1.msra.mxu0 %v212
  %258 = vmatprep.subr.mxu0 0.0
  %259 = vmatpush1.msra.mxu0 %v211
  %260 = vmatprep.subr.mxu0 0.0
  %261 = vmatpush1.msra.mxu0 %v210
  %262 = vmatprep.subr.mxu0 0.0
  %263 = vmatpush1.msra.mxu0 %v209
  %264 = vmatprep.subr.mxu0 0.0
  %265 = vmatpush2.msra.mxu0 0.0
  %266 = vmatprep.subr.mxu0 0.0
  %267 = vmatpush2.msra.mxu0 0.0
  %268 = vmatprep.subr.mxu0 0.0
  %269 = vmatpush2.msra.mxu0 0.0
  %270 = vmatprep.subr.mxu0 0.0
  %271 = vmatpush2.msra.mxu0 0.0
  %272 = vmatprep.subr.mxu0 0.0
  %273 = vmatpush2.msra.mxu0 0.0
  %274 = vmatprep.subr.mxu0 0.0
  %275 = vmatpush2.msra.mxu0 0.0
  %276 = vmatprep.subr.mxu0 0.0
  %277 = vmatpush2.msra.mxu0 0.0
  %278 = vmatprep.subr.mxu0 0.0
  %279 = vmatpush2.msra.mxu0 0.0
  %280 = vmatprep.subr.mxu0 0.0
  %281 = vmatpush2.msra.mxu0 0.0
  %282 = vmatprep.subr.mxu0 0.0
  %283 = vmatpush2.msra.mxu0 0.0
  %284 = vmatprep.subr.mxu0 0.0
  %285 = vmatpush2.msra.mxu0 0.0
  %286 = vmatprep.subr.mxu0 0.0
  %287 = vmatpush2.msra.mxu0 0.0
  %288 = vmatprep.subr.mxu0 0.0
  %289 = vmatpush2.msra.mxu0 0.0
  %290 = vmatprep.subr.mxu0 0.0
  %291 = vmatpush2.msra.mxu0 0.0
  %292 = vmatprep.subr.mxu0 0.0
  %293 = vmatpush2.msra.mxu0 0.0
  %294 = vmatprep.subr.mxu0 0.0
  %295 = vmatpush2.msra.mxu0 0.0
  %296 = vmatprep.mubr.f32.mxu0 0.0
  %297 = vmatmul.mubr.f32.gmra.mxu0 %v208
  %v298 = vpop.f32.mrf.mxu0
  %v299 = vadd.f32 %v230, %v298
  %v300 = vpop.f32.mrf.mxu0
  %301 = vdwg.mxu0
  %vm302 = vcmask 23552
  %v303 = vsel %vm302, %v299, -inf
  %304 = vmax.xlane.f32.xlu0 %v303
  %v305 = vpop.xlane.xlu0 %304
  %v306 = vsub.f32 %v299, %v305
  %v307 = vmul.f32 %v306, 1.442695
  %v308 = vpow.pop %v307
  %v309 = vsel %vm302, %v308, 0.0
  %310 = vadd.xlane.f32.xlu0 %v309
  %v311 = vpop.xlane.xlu0 %310
  %v312 = vrcp.pop %v311
  %v313 = vmul.f32 %v308, %v312
  %314 = vst.msk [vmem:[%s7] sm:$0xff] %vm302, %v313
  // Predicated region
  $region30: #{discriminator_layer.1} parent=0 // pred_check
    _
  $region31: #{discriminator_layer.1} parent=0 // pred_check_branch
    %316 = sbr.rel (0) target = $region33
  $region32: #{discriminator_layer.1} parent=0 // pred_region
    _
  $region33: #{discriminator_layer.1} parent=0 // pred_fallthru
    _
  // Predicated region
  $region34: #{discriminator_layer.1} parent=0 // pred_check
    _
  $region35: #{discriminator_layer.1} parent=0 // pred_check_branch
    %318 = sbr.rel (0) target = $region37
  $region36: #{discriminator_layer.1} parent=0 // pred_region
    _
  $region37: #{discriminator_layer.1} parent=0 // pred_fallthru
    _

</llo_original>
